<compile_context>
chip_gen: v7x
topology: tpu7x:2x2x1
jax: 0.10.0
libtpu: 0.0.40
codegen_flags: <defaults>
</compile_context>

<pallas_src>
import functools

import numpy as np
import jax
import jax.numpy as jnp
from jax import lax
from jax.experimental import pallas as pl
from jax.experimental.pallas import tpu as pltpu


_MIB = 1024 * 1024


def _vmem_limit_bytes():
    """Per-generation VMEM budget with headroom for Mosaic internal scratch."""
    try:
        cap = int(pltpu.get_tpu_info().vmem_capacity_bytes)
    except Exception:  # conservative fallback if the query is unavailable
        cap = 128 * _MIB
    # 3/4 of physical VMEM, capped at 96 MiB: 48 MiB on v7x (64 MiB/core),
    # 96 MiB on v5e/v6e (128 MiB).  Never request the full physical VMEM.
    return int(min(cap * 3 // 4, 96 * _MIB))


def _pick_row_tile(n, max_tile):
    """Largest row tile dividing n that keeps >=4 (else >=2) grid steps."""
    cands = [t for t in (512, 256, 128, 64, 32, 16, 8)
             if t <= max_tile and n % t == 0]
    if not cands:
        return n
    for steps in (4, 2):
        for t in cands:
            if n // t >= steps:
                return t
    return cands[0]


# ---------------------------------------------------------------------------
# Kernel A (tiled): L2-normalize rows of [Xa; Xb], cast to bf16, and emit both
# xhat [2B, D] and the pre-transposed MXU RHS xhat_t [D, 2B] in-kernel.
# Grid is (2, B // tb): axis 0 selects the Xa/Xb half, axis 1 the row tile.
# ---------------------------------------------------------------------------
def _normalize_tiled_kernel(xa_ref, xb_ref, xhat_ref, xhatt_ref):
    is_a = pl.program_id(0) == 0
    v = jnp.where(is_a, xa_ref[...], xb_ref[...]).astype(jnp.float32)
    nsq = jnp.sum(v * v, axis=-1, keepdims=True)
    # torch.CosineSimilarity(eps=1e-8): clamp ~ per-vector norm at 1e-8.
    inv = lax.rsqrt(jnp.maximum(nsq, jnp.float32(1e-16)))
    xn = v * inv
    xhat_ref[...] = xn.astype(xhat_ref.dtype)
    xhatt_ref[...] = xn.T.astype(xhatt_ref.dtype)     # per-tile XLU transpose


# ---------------------------------------------------------------------------
# Kernel A (whole-array fallback for small / unaligned shapes).
# ---------------------------------------------------------------------------
def _normalize_whole_kernel(xa_ref, xb_ref, xhat_ref):
    b = xa_ref.shape[0]

    def _norm(v):
        v = v.astype(jnp.float32)
        nsq = jnp.sum(v * v, axis=-1, keepdims=True)
        inv = lax.rsqrt(jnp.maximum(nsq, jnp.float32(1e-16)))
        return (v * inv).astype(xhat_ref.dtype)

    xhat_ref[0:b, :] = _norm(xa_ref[...])
    xhat_ref[b:2 * b, :] = _norm(xb_ref[...])


# ---------------------------------------------------------------------------
# Kernel B: row-tiled cosine-sim (MXU) + masked cross-entropy + in-kernel Neg
# compaction.  Never writes the [2B, 2B] similarity matrix to HBM.
# ---------------------------------------------------------------------------
def _ic_loss_kernel(meta_ref, xq_ref, xkt_ref, neg_ref, rowloss_ref, *,
                    inv_tau, standard_mask):
    # meta_ref: [TM, 4] int32 per row = (pos_col, target_col, excl_lo, excl_hi)
    # xq_ref:   [TM, D]  bf16 row block of normalized features (MXU LHS)
    # xkt_ref:  [D, 2B]  bf16 normalized features, pre-transposed (resident RHS)
    sim = lax.dot_general(xq_ref[...], xkt_ref[...], (((1,), (0,)), ((), ())),
                          preferred_element_type=jnp.float32)      # [TM,2B] f32
    tm, n2b = sim.shape

    meta = meta_ref[...]
    tgt_col = meta[:, 1:2]
    dlo = meta[:, 2:3]
    dhi = meta[:, 3:4]

    col = lax.broadcasted_iota(jnp.int32, (tm, n2b), 1)
    scaled = sim * jnp.float32(inv_tau)

    # Constant LSE shift: after L2-normalization every sim <= ~1 (bf16 rounding
    # can nudge the diagonal slightly above 1), so 1.05/tau is an overflow-safe
    # shift and the full-row max reduction (XLU) is not needed.
    m = jnp.float32(inv_tau * 1.05)
    big_neg = jnp.float32(-1e30)                       # finite: safe in f32

    if standard_mask:
        # Standard SimCLR mask: excluded columns are {diag, pos}.  The CE
        # denominator exp(pos) + sum_neg exp(.) equals the sum over all
        # non-diagonal columns, so mask only the diagonal and skip the separate
        # pos extraction / extra exp entirely.
        row = (pl.program_id(0) * tm
               + lax.broadcasted_iota(jnp.int32, (tm, 1), 0))      # global row
        masked = jnp.where(col == row, big_neg, scaled)
        s = jnp.sum(jnp.exp(masked - m), axis=-1, keepdims=True)
    else:
        pos_col = meta[:, 0:1]
        masked = jnp.where((col == dlo) | (col == dhi), big_neg, scaled)
        pos = jnp.sum(jnp.where(col == pos_col, scaled, 0.0),
                      axis=-1, keepdims=True)
        s = jnp.sum(jnp.exp(masked - m), axis=-1, keepdims=True) + jnp.exp(pos - m)

    tgt = jnp.sum(jnp.where(col == tgt_col, scaled, 0.0), axis=-1, keepdims=True)
    # Per-row CE; reduced with jnp.mean in the wrapper (a per-tile scalar SMEM
    # partial sum would also work but is a negligible further win).
    rowloss_ref[...] = (m + jnp.log(s)) - tgt

    # Neg[i, k] = Sim[i, k + (k >= dlo) + (k >= dhi-1)]: drop cols dlo < dhi,
    # keep ascending order (== Sim[mask_neg].view(2B, -1) semantics).
    if n2b % 128 == 0:
        # Lane-aligned width: build the shifted views with XLU lane rotates
        # (no materialized unaligned-slice copies).  The wrapped lanes are
        # never selected for k <= n2b-3 and are sliced off before the store.
        s1 = pltpu.roll(sim, shift=n2b - 1, axis=1)    # sim[:, k+1] at lane k
        s2 = pltpu.roll(sim, shift=n2b - 2, axis=1)    # sim[:, k+2] at lane k
        k = lax.broadcasted_iota(jnp.int32, (tm, n2b), 1)
        neg_full = jnp.where(k < dlo, sim, jnp.where(k < dhi - 1, s1, s2))
        neg_ref[...] = neg_full[:, 0:n2b - 2].astype(neg_ref.dtype)
    else:
        s0 = sim[:, 0:n2b - 2]
        s1 = sim[:, 1:n2b - 1]
        s2 = sim[:, 2:n2b]
        k = lax.broadcasted_iota(jnp.int32, (tm, n2b - 2), 1)
        neg_ref[...] = jnp.where(k < dlo, s0,
                                 jnp.where(k < dhi - 1, s1, s2)).astype(neg_ref.dtype)


def make_simclr_mask_neg(batch_size):
    """Standard SimCLR negative mask: drop the diagonal and the positive pair."""
    n = 2 * batch_size
    mask = np.ones((n, n), dtype=bool)
    np.fill_diagonal(mask, False)
    for i in range(batch_size):
        mask[i, batch_size + i] = False
        mask[batch_size + i, i] = False
    return mask


class ICLossPallas:
    """Pallas port of IC_Loss.forward: returns (loss, Neg)."""

    def __init__(self, batch_size, tau_ic, mask_neg, neg_dtype=jnp.bfloat16):
        self.batch_size = int(batch_size)
        self.tau_ic = float(tau_ic)
        # Neg already comes from a bf16 MXU matmul; emitting it as bf16 halves
        # the dominant HBM writeback.  Pass neg_dtype=jnp.float32 if downstream
        # needs full-precision cosine similarities.
        self._neg_dtype = neg_dtype
        n = 2 * self.batch_size
        mask = np.asarray(mask_neg, dtype=bool)
        assert mask.shape == (n, n)
        excl = [np.where(~mask[i])[0] for i in range(n)]
        # Sim[mask_neg].view(2B,-1) requires a constant kept-count per row; the
        # standard SimCLR mask drops exactly 2 columns (diag + positive).
        # TODO(synk): masks dropping != 2 columns per row are not supported here.
        assert all(e.size == 2 for e in excl), "expected exactly 2 masked-out columns per row"
        excl = np.stack(excl).astype(np.int32)                # ascending per row
        diag = np.arange(n)
        pos = (diag + self.batch_size) % n
        self._standard_mask = bool(
            np.array_equal(excl, np.sort(np.stack([diag, pos], axis=1), axis=1)))
        self._dlo = jnp.asarray(excl[:, 0])
        self._dhi = jnp.asarray(excl[:, 1])
        self._pos_col = jnp.asarray(pos.astype(np.int32))

        self._vmem_limit = _vmem_limit_bytes()
        # v5e/v6e (128 MiB VMEM) may use tm=512; keep tm<=256 on v7x (64 MiB).
        self._max_row_tile = 512 if self._vmem_limit >= 96 * _MIB else 256
        self._rhs_single_buffer = True
        self._fwd = jax.jit(self._forward)

    def __call__(self, Xa, Xb, labels):
        try:
            return self._fwd(Xa, Xb, labels)
        except Exception:
            if not self._rhs_single_buffer:
                raise
            # Retry once with default double-buffering in case this jax version
            # rejects pl.Buffered(1) on the grid-invariant RHS operand.
            self._rhs_single_buffer = False
            self._fwd = jax.jit(self._forward)
            return self._fwd(Xa, Xb, labels)

    def _forward(self, Xa, Xb, labels):
        B = self.batch_size
        n = 2 * B
        D = Xa.shape[-1]
        vmem = self._vmem_limit

        # ----- Kernel A: L2-normalize -> bf16 (+ in-kernel transpose) --------
        aligned = (B % 128 == 0) and (D % 128 == 0)
        if aligned:
            tb = next(t for t in (512, 256, 128) if B % t == 0)
            nb = B // tb
            xhat, xhat_t = pl.pallas_call(
                _normalize_tiled_kernel,
                out_shape=(jax.ShapeDtypeStruct((n, D), jnp.bfloat16),
                           jax.ShapeDtypeStruct((D, n), jnp.bfloat16)),
                grid=(2, nb),
                in_specs=[pl.BlockSpec((tb, D), lambda s, i: (i, 0)),
                          pl.BlockSpec((tb, D), lambda s, i: (i, 0))],
                out_specs=(pl.BlockSpec((tb, D), lambda s, i: (s * nb + i, 0)),
                           pl.BlockSpec((D, tb), lambda s, i: (0, s * nb + i))),
                compiler_params=pltpu.CompilerParams(
                    dimension_semantics=("parallel", "parallel"),
                    vmem_limit_bytes=vmem),
            )(Xa, Xb)
        else:
            # Whole-array path for small / unaligned shapes.
            # TODO(synk): large B*D that is not (128,128)-aligned still takes
            # this un-tiled path; padded tiling would be needed to bound VMEM.
            xhat = pl.pallas_call(
                _normalize_whole_kernel,
                out_shape=jax.ShapeDtypeStruct((n, D), jnp.bfloat16),
                in_specs=[pl.BlockSpec(memory_space=pltpu.MemorySpace.VMEM),
                          pl.BlockSpec(memory_space=pltpu.MemorySpace.VMEM)],
                out_specs=pl.BlockSpec(memory_space=pltpu.MemorySpace.VMEM),
                compiler_params=pltpu.CompilerParams(vmem_limit_bytes=vmem),
            )(Xa, Xb)
            xhat_t = jnp.swapaxes(xhat, 0, 1)          # [D, 2B] MXU RHS

        # ----- label -> Sim column of the target logit (O(2B) arithmetic) ----
        lab = labels.astype(jnp.int32)
        k = lab - 1
        neg_src = (k + (k >= self._dlo).astype(jnp.int32)
                     + (k >= self._dhi - 1).astype(jnp.int32))
        tgt_col = jnp.where(lab == 0, self._pos_col, neg_src)
        meta = jnp.stack([self._pos_col, tgt_col, self._dlo, self._dhi],
                         axis=1)                                    # [2B, 4] i32

        tm = _pick_row_tile(n, self._max_row_tile)
        grid = (n // tm,)

        if self._rhs_single_buffer:
            # Grid-invariant RHS: a single buffer halves its VMEM footprint.
            rhs_spec = pl.BlockSpec((D, n), lambda i: (0, 0),
                                    pipeline_mode=pl.Buffered(1))
        else:
            rhs_spec = pl.BlockSpec((D, n), lambda i: (0, 0))

        neg_bytes = np.dtype(self._neg_dtype).itemsize
        flops = 2 * n * n * D
        bytes_accessed = (n * D * 2 + D * n * 2 + n * 4 * 4
                          + n * (n - 2) * neg_bytes + n * 4)

        # TODO(synk): for very large D (resident [D,2B] RHS > ~16 MiB on v7x)
        # add a K-('arbitrary') grid axis over D with an f32 VMEM accumulator.
        neg, rowloss = pl.pallas_call(
            functools.partial(_ic_loss_kernel, inv_tau=1.0 / self.tau_ic,
                              standard_mask=self._standard_mask),
            out_shape=(jax.ShapeDtypeStruct((n, n - 2), self._neg_dtype),
                       jax.ShapeDtypeStruct((n, 1), jnp.float32)),
            grid=grid,
            in_specs=[pl.BlockSpec((tm, 4), lambda i: (i, 0)),
                      pl.BlockSpec((tm, D), lambda i: (i, 0)),
                      rhs_spec],
            out_specs=(pl.BlockSpec((tm, n - 2), lambda i: (i, 0)),
                       pl.BlockSpec((tm, 1), lambda i: (i, 0))),
            compiler_params=pltpu.CompilerParams(
                dimension_semantics=("parallel",),
                vmem_limit_bytes=vmem),
            cost_estimate=pl.CostEstimate(flops=flops,
                                          transcendentals=n * n + n,
                                          bytes_accessed=bytes_accessed),
        )(meta, xhat, xhat_t)

        loss = jnp.mean(rowloss)              # CrossEntropyLoss(reduction='mean')
        return loss, neg


if __name__ == "__main__":
    TAU = 0.5

    def reference(xa, xb, labels, mask, B, tau):
        n = 2 * B
        x = np.concatenate([xa, xb], axis=0).astype(np.float64)
        dots = x @ x.T
        nrm = np.linalg.norm(x, axis=1)
        sim = dots / np.maximum(np.outer(nrm, nrm), 1e-8)
        pos = sim[np.arange(n), (np.arange(n) + B) % n][:, None]
        neg = np.stack([sim[i][mask[i]] for i in range(n)])
        logits = np.concatenate([pos, neg], axis=1) / tau
        m = logits.max(axis=1, keepdims=True)
        lse = m[:, 0] + np.log(np.exp(logits - m).sum(axis=1))
        loss = float(np.mean(lse - logits[np.arange(n), labels]))
        return loss, neg

    def to_np(a):
        return np.asarray(a.astype(jnp.float32))

    key = jax.random.PRNGKey(0)

    # ---- Test 1: small standard SimCLR mask (slice-gather path) ------------
    B, D = 4, 32
    n = 2 * B
    mask = make_simclr_mask_neg(B)
    mod = ICLossPallas(B, TAU, mask)
    ka, kb = jax.random.split(key)
    Xa = jax.random.normal(ka, (B, D), dtype=jnp.float32)
    Xb = jax.random.normal(kb, (B, D), dtype=jnp.float32)
    labels0 = jnp.zeros((n,), dtype=jnp.int32)                      # standard labels
    labels1 = jnp.asarray(np.arange(n) % (n - 1), dtype=jnp.int32)  # exercise mapping

    loss0, neg0 = jax.block_until_ready(mod(Xa, Xb, labels0))
    loss1, neg1 = jax.block_until_ready(mod(Xa, Xb, labels1))
    lr0, nr0 = reference(np.asarray(Xa), np.asarray(Xb), np.asarray(labels0), mask, B, TAU)
    lr1, nr1 = reference(np.asarray(Xa), np.asarray(Xb), np.asarray(labels1), mask, B, TAU)
    assert np.allclose(float(loss0), lr0, atol=2e-2, rtol=2e-2), (float(loss0), lr0)
    assert np.allclose(float(loss1), lr1, atol=2e-2, rtol=2e-2), (float(loss1), lr1)
    assert np.allclose(to_np(neg0), nr0, atol=2e-2), np.abs(to_np(neg0) - nr0).max()
    assert np.allclose(to_np(neg1), nr1, atol=2e-2)

    # ---- Test 2: non-standard mask (generic CE path) ------------------------
    maskg = np.ones((n, n), dtype=bool)
    np.fill_diagonal(maskg, False)
    for i in range(n):
        maskg[i, (i + 2) % n] = False
    modg = ICLossPallas(B, TAU, maskg)
    lossg, negg = jax.block_until_ready(modg(Xa, Xb, labels1))
    lrg, nrg = reference(np.asarray(Xa), np.asarray(Xb), np.asarray(labels1), maskg, B, TAU)
    assert np.allclose(float(lossg), lrg, atol=2e-2, rtol=2e-2), (float(lossg), lrg)
    assert np.allclose(to_np(negg), nrg, atol=2e-2)

    # ---- Test 3: lane-aligned width (tiled normalize, roll gather, grid>=4) -
    B2, D2 = 128, 256
    n2 = 2 * B2
    mask2 = make_simclr_mask_neg(B2)
    mod2 = ICLossPallas(B2, TAU, mask2)
    k2a, k2b = jax.random.split(jax.random.PRNGKey(1))
    Xa2 = jax.random.normal(k2a, (B2, D2), dtype=jnp.float32)
    Xb2 = jax.random.normal(k2b, (B2, D2), dtype=jnp.float32)
    labels2 = jnp.zeros((n2,), dtype=jnp.int32)
    loss2, neg2 = jax.block_until_ready(mod2(Xa2, Xb2, labels2))
    lr2, nr2 = reference(np.asarray(Xa2), np.asarray(Xb2), np.asarray(labels2), mask2, B2, TAU)
    assert np.allclose(float(loss2), lr2, atol=3e-2, rtol=3e-2), (float(loss2), lr2)
    assert np.allclose(to_np(neg2), nr2, atol=3e-2), np.abs(to_np(neg2) - nr2).max()

    print("KERNEL_OK")
</pallas_src>

<mosaic_0001>
module attributes {stable_mosaic.version = 11 : i64} {
  func.func @_normalize_whole_kernel(%arg0: memref<4x32xf32, #tpu.memory_space<vmem>>, %arg1: memref<4x32xf32, #tpu.memory_space<vmem>>, %arg2: memref<8x32xbf16, #tpu.memory_space<vmem>>) attributes {dimension_semantics = [], scalar_prefetch = 0 : i64, scratch_operands = 0 : i64, tpu.core_type = #tpu.core_type<tc>} {
    %c0 = arith.constant 0 : index
    %c0_0 = arith.constant 0 : index
    %0 = vector.load %arg0[%c0, %c0_0] : memref<4x32xf32, #tpu.memory_space<vmem>>, vector<4x32xf32>
    %1 = arith.mulf %0, %0 : vector<4x32xf32>
    %cst = arith.constant dense<0.000000e+00> : vector<4xf32>
    %2 = vector.multi_reduction <add>, %1, %cst [1] : vector<4x32xf32> to vector<4xf32>
    %3 = vector.shape_cast %2 : vector<4xf32> to vector<4x1xf32>
    %cst_1 = arith.constant 1.000000e-16 : f32
    %4 = vector.broadcast %cst_1 : f32 to vector<4x1xf32>
    %5 = arith.maximumf %3, %4 : vector<4x1xf32>
    %6 = math.rsqrt %5 : vector<4x1xf32>
    %7 = vector.broadcast %6 : vector<4x1xf32> to vector<4x32xf32>
    %8 = arith.mulf %0, %7 : vector<4x32xf32>
    %9 = arith.truncf %8 : vector<4x32xf32> to vector<4x32xbf16>
    %c0_2 = arith.constant 0 : index
    %c0_3 = arith.constant 0 : index
    %10 = vector.load %arg2[%c0_2, %c0_3] : memref<8x32xbf16, #tpu.memory_space<vmem>>, vector<4x32xbf16>
    tpu.vector_store %arg2[%c0_2, %c0_3], %9 {strides = array<i32>} : memref<8x32xbf16, #tpu.memory_space<vmem>>, vector<4x32xbf16>,
    %c0_4 = arith.constant 0 : index
    %c0_5 = arith.constant 0 : index
    %11 = vector.load %arg1[%c0_4, %c0_5] : memref<4x32xf32, #tpu.memory_space<vmem>>, vector<4x32xf32>
    %12 = arith.mulf %11, %11 : vector<4x32xf32>
    %cst_6 = arith.constant dense<0.000000e+00> : vector<4xf32>
    %13 = vector.multi_reduction <add>, %12, %cst_6 [1] : vector<4x32xf32> to vector<4xf32>
    %14 = vector.shape_cast %13 : vector<4xf32> to vector<4x1xf32>
    %cst_7 = arith.constant 1.000000e-16 : f32
    %15 = vector.broadcast %cst_7 : f32 to vector<4x1xf32>
    %16 = arith.maximumf %14, %15 : vector<4x1xf32>
    %17 = math.rsqrt %16 : vector<4x1xf32>
    %18 = vector.broadcast %17 : vector<4x1xf32> to vector<4x32xf32>
    %19 = arith.mulf %11, %18 : vector<4x32xf32>
    %20 = arith.truncf %19 : vector<4x32xf32> to vector<4x32xbf16>
    %c4 = arith.constant 4 : index
    %c0_8 = arith.constant 0 : index
    %21 = vector.load %arg2[%c4, %c0_8] : memref<8x32xbf16, #tpu.memory_space<vmem>>, vector<4x32xbf16>
    tpu.vector_store %arg2[%c4, %c0_8], %20 {strides = array<i32>} : memref<8x32xbf16, #tpu.memory_space<vmem>>, vector<4x32xbf16>,
    return
  }
}

module attributes {stable_mosaic.version = 11 : i64} {
  func.func @_ic_loss_kernel(%arg0: i32, %arg1: memref<8x4xi32, #tpu.memory_space<vmem>>, %arg2: memref<8x32xbf16, #tpu.memory_space<vmem>>, %arg3: memref<32x8xbf16, #tpu.memory_space<vmem>>, %arg4: memref<8x6xbf16, #tpu.memory_space<vmem>>, %arg5: memref<8x1xf32, #tpu.memory_space<vmem>>) attributes {dimension_semantics = [#tpu.dimension_semantics<parallel>], iteration_bounds = array<i64: 1>, scalar_prefetch = 0 : i64, scratch_operands = 0 : i64, tpu.core_type = #tpu.core_type<tc>, window_params = [{transform_indices = @transform_0, window_bounds = array<i64: 8, 4>}, {transform_indices = @transform_1, window_bounds = array<i64: 8, 32>}, {pipeline_mode = #tpu.pipeline_mode<synchronous>, transform_indices = @transform_2, window_bounds = array<i64: 32, 8>}, {transform_indices = @transform_3, window_bounds = array<i64: 8, 6>}, {transform_indices = @transform_4, window_bounds = array<i64: 8, 1>}]} {
    %c0 = arith.constant 0 : index
    %c0_0 = arith.constant 0 : index
    %0 = vector.load %arg2[%c0, %c0_0] : memref<8x32xbf16, #tpu.memory_space<vmem>>, vector<8x32xbf16>
    %c0_1 = arith.constant 0 : index
    %c0_2 = arith.constant 0 : index
    %1 = vector.load %arg3[%c0_1, %c0_2] : memref<32x8xbf16, #tpu.memory_space<vmem>>, vector<32x8xbf16>
    %cst = arith.constant dense<0.000000e+00> : vector<8x8xf32>
    %2 = tpu.matmul %0, %1, %cst {dimension_numbers = #tpu.dot_dimension_numbers<[1], [0], [0], [1], [0, 0, 1, 1], [], []>} : vector<8x32xbf16>, vector<32x8xbf16>, vector<8x8xf32> -> vector<8x8xf32>
    %c0_3 = arith.constant 0 : index
    %c0_4 = arith.constant 0 : index
    %3 = vector.load %arg1[%c0_3, %c0_4] : memref<8x4xi32, #tpu.memory_space<vmem>>, vector<8x4xi32>
    %4 = vector.extract_strided_slice %3 {offsets = [0, 1], sizes = [8, 1], strides = [1, 1]} : vector<8x4xi32> to vector<8x1xi32>
    %5 = vector.extract_strided_slice %3 {offsets = [0, 2], sizes = [8, 1], strides = [1, 1]} : vector<8x4xi32> to vector<8x1xi32>
    %6 = vector.extract_strided_slice %3 {offsets = [0, 3], sizes = [8, 1], strides = [1, 1]} : vector<8x4xi32> to vector<8x1xi32>
    %7 = tpu.iota {dimensions = array<i32: 1>} : vector<8x8xi32>
    %cst_5 = arith.constant 2.000000e+00 : f32
    %8 = vector.broadcast %cst_5 : f32 to vector<8x8xf32>
    %9 = arith.mulf %2, %8 : vector<8x8xf32>
    %c8_i32 = arith.constant 8 : i32
    %10 = arith.muli %arg0, %c8_i32 : i32
    %11 = tpu.iota {dimensions = array<i32: 0>} : vector<8x1xi32>
    %12 = vector.broadcast %10 : i32 to vector<8x1xi32>
    %13 = arith.addi %12, %11 : vector<8x1xi32>
    %14 = vector.broadcast %13 : vector<8x1xi32> to vector<8x8xi32>
    %15 = arith.cmpi eq, %7, %14 : vector<8x8xi32>
    %cst_6 = arith.constant -1.000000e+30 : f32
    %16 = vector.broadcast %cst_6 : f32 to vector<8x8xf32>
    %17 = arith.select %15, %16, %9 : vector<8x8xi1>, vector<8x8xf32>
    %cst_7 = arith.constant 2.100000e+00 : f32
    %18 = vector.broadcast %cst_7 : f32 to vector<8x8xf32>
    %19 = arith.subf %17, %18 : vector<8x8xf32>
    %20 = math.exp %19 : vector<8x8xf32>
    %cst_8 = arith.constant dense<0.000000e+00> : vector<8xf32>
    %21 = vector.multi_reduction <add>, %20, %cst_8 [1] : vector<8x8xf32> to vector<8xf32>
    %22 = vector.shape_cast %21 : vector<8xf32> to vector<8x1xf32>
    %23 = vector.broadcast %4 : vector<8x1xi32> to vector<8x8xi32>
    %24 = arith.cmpi eq, %7, %23 : vector<8x8xi32>
    %cst_9 = arith.constant 0.000000e+00 : f32
    %25 = vector.broadcast %cst_9 : f32 to vector<8x8xf32>
    %26 = arith.select %24, %9, %25 : vector<8x8xi1>, vector<8x8xf32>
    %cst_10 = arith.constant dense<0.000000e+00> : vector<8xf32>
    %27 = vector.multi_reduction <add>, %26, %cst_10 [1] : vector<8x8xf32> to vector<8xf32>
    %28 = vector.shape_cast %27 : vector<8xf32> to vector<8x1xf32>
    %29 = math.log %22 : vector<8x1xf32>
    %cst_11 = arith.constant 2.100000e+00 : f32
    %30 = vector.broadcast %cst_11 : f32 to vector<8x1xf32>
    %31 = arith.addf %30, %29 : vector<8x1xf32>
    %32 = arith.subf %31, %28 : vector<8x1xf32>
    %c0_12 = arith.constant 0 : index
    %c0_13 = arith.constant 0 : index
    %33 = vector.load %arg5[%c0_12, %c0_13] : memref<8x1xf32, #tpu.memory_space<vmem>>, vector<8x1xf32>
    tpu.vector_store %arg5[%c0_12, %c0_13], %32 {strides = array<i32>} : memref<8x1xf32, #tpu.memory_space<vmem>>, vector<8x1xf32>,
    %34 = vector.extract_strided_slice %2 {offsets = [0, 0], sizes = [8, 6], strides = [1, 1]} : vector<8x8xf32> to vector<8x6xf32>
    %35 = vector.extract_strided_slice %2 {offsets = [0, 1], sizes = [8, 6], strides = [1, 1]} : vector<8x8xf32> to vector<8x6xf32>
    %36 = vector.extract_strided_slice %2 {offsets = [0, 2], sizes = [8, 6], strides = [1, 1]} : vector<8x8xf32> to vector<8x6xf32>
    %37 = tpu.iota {dimensions = array<i32: 1>} : vector<8x6xi32>
    %38 = vector.broadcast %5 : vector<8x1xi32> to vector<8x6xi32>
    %39 = arith.cmpi slt, %37, %38 : vector<8x6xi32>
    %c1_i32 = arith.constant 1 : i32
    %40 = vector.broadcast %c1_i32 : i32 to vector<8x1xi32>
    %41 = arith.subi %6, %40 : vector<8x1xi32>
    %42 = vector.broadcast %41 : vector<8x1xi32> to vector<8x6xi32>
    %43 = arith.cmpi slt, %37, %42 : vector<8x6xi32>
    %44 = arith.select %43, %35, %36 : vector<8x6xi1>, vector<8x6xf32>
    %45 = arith.select %39, %34, %44 : vector<8x6xi1>, vector<8x6xf32>
    %46 = arith.truncf %45 : vector<8x6xf32> to vector<8x6xbf16>
    %c0_14 = arith.constant 0 : index
    %c0_15 = arith.constant 0 : index
    %47 = vector.load %arg4[%c0_14, %c0_15] : memref<8x6xbf16, #tpu.memory_space<vmem>>, vector<8x6xbf16>
    tpu.vector_store %arg4[%c0_14, %c0_15], %46 {strides = array<i32>} : memref<8x6xbf16, #tpu.memory_space<vmem>>, vector<8x6xbf16>,
    return
  }
  func.func @transform_0(%arg0: i32) -> (i32, i32) {
    %c0_i32 = arith.constant 0 : i32
    %c0_i32_0 = arith.constant 0 : i32
    return %arg0, %c0_i32 : i32, i32
  }
  func.func @transform_1(%arg0: i32) -> (i32, i32) {
    %c0_i32 = arith.constant 0 : i32
    %c0_i32_0 = arith.constant 0 : i32
    return %arg0, %c0_i32 : i32, i32
  }
  func.func @transform_2(%arg0: i32) -> (i32, i32) {
    %c0_i32 = arith.constant 0 : i32
    %c0_i32_0 = arith.constant 0 : i32
    %c0_i32_1 = arith.constant 0 : i32
    return %c0_i32, %c0_i32_0 : i32, i32
  }
  func.func @transform_3(%arg0: i32) -> (i32, i32) {
    %c0_i32 = arith.constant 0 : i32
    %c0_i32_0 = arith.constant 0 : i32
    return %arg0, %c0_i32 : i32, i32
  }
  func.func @transform_4(%arg0: i32) -> (i32, i32) {
    %c0_i32 = arith.constant 0 : i32
    %c0_i32_0 = arith.constant 0 : i32
    return %arg0, %c0_i32 : i32, i32
  }
}

</mosaic_0001>

<llo_original>
// kernel: _forward.2
$region0: #{_forward.2}
  #allocation0 [shape = 'u32[]', space=smem, size = 0x4, offset = 0x4, fixed_abs, tag = 'smem constant byte address 0x4 - core index']
  #allocation1 [shape = 'u32[144,128]{1,0:T(1,128)}', space=vmem, size = 0x12000, scoped, tag = 'internal scratch']
  %s0 = inlined_call_operand.hbm [shape: f32[4,32], index: 0, kind: input, shape index: {}]
  %s1 = inlined_call_operand.hbm [shape: f32[4,32], index: 1, kind: input, shape index: {}]
  %s2 = inlined_call_operand.hbm [shape: bf16[8,32], index: 2, kind: output, shape index: {}]
  %s3 = sld [smem:[#allocation0]]
  $region26: #{_forward.2} parent=0
    _
  %s5 = ssub.s32 1, %s3
  %s6 = scalar_select 0, %s5, %s3
  $region1: #{_forward.2} parent=0
    #allocation2 [shape = 'u8[2048]{0}', space=vmem, size = 0x800, scoped, tag = 'input window, operand 0, single buffered']
    #allocation3 [shape = 's32[1]{0}', space=sflag, size = 0x4, scoped, tag = 'scoped memory for _forward.2']
    #allocation4 [shape = 's32[1]{0}', space=sflag, size = 0x4, scoped, tag = 'scoped memory for _forward.2']
    #allocation5 [shape = 'u8[2048]{0}', space=vmem, size = 0x800, scoped, tag = 'input window, operand 1, single buffered']
    #allocation6 [shape = 's32[1]{0}', space=sflag, size = 0x4, scoped, tag = 'scoped memory for _forward.2']
    #allocation7 [shape = 'u8[2048]{0}', space=vmem, size = 0x800, scoped, tag = 'output window, operand 0, single buffered']
    %7 = vsyncpa [#allocation3], 0
    %8 = vsyncpa [#allocation6], 0
    %9 = vsyncpa [#allocation4], 0
    // Predicated region
    $region2: #{_forward.2} parent=1 // pred_check
      _
    $region3: #{_forward.2} parent=1 // pred_check_branch
      %11 = sbr.rel (0) target = $region5
    $region4: #{_forward.2} parent=1 // pred_region
      %s13 = ssub.s32 64, 64
      %14 = vsyncadd [#allocation3], %s13
      %s16 = sshll.u32 [#allocation2], 4
      %s17 = int_to_ptr.vmem [resolvable:$true] %s16
      %19 = dma.hbm_to_vmem [thread:$0]  %s0, 64, %s17, [#allocation3]
    $region5: #{_forward.2} parent=1 // pred_fallthru
      _
    // Predicated region
    $region6: #{_forward.2} parent=1 // pred_check
      _
    $region7: #{_forward.2} parent=1 // pred_check_branch
      %21 = sbr.rel (0) target = $region9
    $region8: #{_forward.2} parent=1 // pred_region
      %s23 = ssub.s32 64, 64
      %24 = vsyncadd [#allocation6], %s23
      %s26 = sshll.u32 [#allocation5], 4
      %s27 = int_to_ptr.vmem [resolvable:$true] %s26
      %29 = dma.hbm_to_vmem [thread:$0]  %s1, 64, %s27, [#allocation6]
    $region9: #{_forward.2} parent=1 // pred_fallthru
      _
    // Predicated region
    $region10: #{_forward.2} parent=1 // pred_check
      _
    $region11: #{_forward.2} parent=1 // pred_check_branch
      %31 = sbr.rel (0) target = $region13
    $region12: #{_forward.2} parent=1 // pred_region
      %32 = dma.done [#allocation3], 64
    $region13: #{_forward.2} parent=1 // pred_fallthru
      _
    // Predicated region
    $region14: #{_forward.2} parent=1 // pred_check
      _
    $region15: #{_forward.2} parent=1 // pred_check_branch
      %34 = sbr.rel (0) target = $region17
    $region16: #{_forward.2} parent=1 // pred_region
      %35 = dma.done [#allocation6], 64
    $region17: #{_forward.2} parent=1 // pred_fallthru
      _
    %v36 = vld [vmem:[#allocation2] sm:$0xf]
    %v37 = vmul.f32 %v36, %v36
    %vm38 = vcmask 257024
    %v39 = vsel %vm38, %v37, 0.0
    %40 = vadd.xlane.f32.xlu0 %v39
    %v41 = vpop.xlane.xlu0 %40
    %v42 = vmax.f32 %v41, 1e-16
    %v43 = vrsqrt.pop %v42
    %v44 = vmul.f32 %v36, %v43
    %v45 = vpack.c.bf16 %v44, %v44
    %vm46 = vcmask 254976
    %47 = vst.msk [vmem:[#allocation7] sm:$0x3] %vm46, %v45
    %v48 = vld [vmem:[#allocation5] sm:$0xf]
    %v49 = vmul.f32 %v48, %v48
    %v50 = vsel %vm38, %v49, 0.0
    %51 = vadd.xlane.f32.xlu0 %v50
    %v52 = vpop.xlane.xlu0 %51
    %v53 = vmax.f32 %v52, 1e-16
    %v54 = vrsqrt.pop %v53
    %v55 = vmul.f32 %v48, %v54
    %v56 = vpack.c.bf16 %v55, %v55
    %v58 = vunpack.c.l.b16 %v56
    %v59 = vpack.c.b16 %v58, %v58
    %v60 = vrot.slane %v59, 6
    %vm62 = vcmask 257026
    %63 = vst.msk [vmem:[#allocation7] sm:$0xc] %vm62, %v60
    // Predicated region
    $region18: #{_forward.2} parent=1 // pred_check
      _
    $region19: #{_forward.2} parent=1 // pred_check_branch
      %65 = sbr.rel (0) target = $region21
    $region20: #{_forward.2} parent=1 // pred_region
      %s67 = ssub.s32 64, 64
      %68 = vsyncadd [#allocation4], %s67
      %s70 = sshll.u32 [#allocation7], 4
      %s71 = int_to_ptr.vmem [resolvable:$true] %s70
      %73 = dma.vmem_to_hbm [thread:$0]  %s71, 64, %s2, [#allocation4]
    $region21: #{_forward.2} parent=1 // pred_fallthru
      _
    // Predicated region
    $region22: #{_forward.2} parent=1 // pred_check
      _
    $region23: #{_forward.2} parent=1 // pred_check_branch
      %75 = sbr.rel (0) target = $region25
    $region24: #{_forward.2} parent=1 // pred_region
      %76 = dma.done [#allocation4], 64
    $region25: #{_forward.2} parent=1 // pred_fallthru
      _
    %77 = vsyncpa [#allocation3], 1
    %78 = vsyncpa [#allocation6], 1
    %79 = vsyncpa [#allocation4], 1

// kernel: _forward.3
$region0: #{_forward.3}
  #allocation0 [shape = 'u32[]', space=smem, size = 0x4, offset = 0x4, fixed_abs, tag = 'smem constant byte address 0x4 - core index']
  #allocation1 [shape = 'u32[144,128]{1,0:T(1,128)}', space=vmem, size = 0x12000, scoped, tag = 'internal scratch']
  %s0 = inlined_call_operand.hbm [shape: s32[8,4], index: 0, kind: input, shape index: {}]
  %s1 = inlined_call_operand.hbm [shape: bf16[8,32], index: 1, kind: input, shape index: {}]
  %s2 = inlined_call_operand.hbm [shape: bf16[32,8], index: 2, kind: input, shape index: {}]
  %s3 = inlined_call_operand.hbm [shape: bf16[8,6], index: 3, kind: output, shape index: {0}]
  %s4 = inlined_call_operand.hbm [shape: f32[8,1], index: 4, kind: output, shape index: {1}]
  %5 = xla_tuple %s3, %s4
  %s6 = sld [smem:[#allocation0]]
  $region42: #{_forward.3} parent=0
    _
  %s8 = ssub.s32 1, %s6
  %s9 = scalar_select 0, %s8, %s6
  $region1: #{_forward.3} parent=0
    #allocation2 [shape = 'u8[4096]{0}', space=vmem, size = 0x1000, scoped, tag = 'input window, operand 0, single buffered']
    #allocation3 [shape = 's32[1]{0}', space=sflag, size = 0x4, scoped, tag = 'scoped memory for _forward.3']
    #allocation4 [shape = 's32[1]{0}', space=sflag, size = 0x4, scoped, tag = 'scoped memory for _forward.3']
    #allocation5 [shape = 'u8[2048]{0}', space=vmem, size = 0x800, scoped, tag = 'input window, operand 1, single buffered']
    #allocation6 [shape = 's32[1]{0}', space=sflag, size = 0x4, scoped, tag = 'scoped memory for _forward.3']
    #allocation7 [shape = 'u8[8192]{0}', space=vmem, size = 0x2000, scoped, tag = 'input window, operand 2, single buffered']
    #allocation8 [shape = 'u8[2048]{0}', space=vmem, size = 0x800, scoped, tag = 'output window, operand 0, single buffered']
    #allocation9 [shape = 'u8[4096]{0}', space=vmem, size = 0x1000, scoped, tag = 'output window, operand 1, single buffered']
    #allocation10 [shape = 's32[1]{0}', space=sflag, size = 0x4, scoped, tag = 'scoped memory for _forward.3']
    %10 = vsyncpa [#allocation3], 0
    %11 = vsyncpa [#allocation6], 0
    %12 = vsyncpa [#allocation4], 0
    %13 = vsyncpa [#allocation10], 0
    // Predicated region
    $region2: #{_forward.3} parent=1 // pred_check
      _
    $region3: #{_forward.3} parent=1 // pred_check_branch
      %15 = sbr.rel (0) target = $region5
    $region4: #{_forward.3} parent=1 // pred_region
      %s17 = ssub.s32 128, 128
      %18 = vsyncadd [#allocation3], %s17
      %s20 = sshll.u32 [#allocation2], 4
      %s21 = int_to_ptr.vmem [resolvable:$true] %s20
      %23 = dma.hbm_to_vmem [thread:$0]  %s0, 128, %s21, [#allocation3]
    $region5: #{_forward.3} parent=1 // pred_fallthru
      _
    // Predicated region
    $region6: #{_forward.3} parent=1 // pred_check
      _
    $region7: #{_forward.3} parent=1 // pred_check_branch
      %25 = sbr.rel (0) target = $region9
    $region8: #{_forward.3} parent=1 // pred_region
      %s27 = ssub.s32 64, 64
      %28 = vsyncadd [#allocation6], %s27
      %s30 = sshll.u32 [#allocation5], 4
      %s31 = int_to_ptr.vmem [resolvable:$true] %s30
      %33 = dma.hbm_to_vmem [thread:$0]  %s1, 64, %s31, [#allocation6]
    $region9: #{_forward.3} parent=1 // pred_fallthru
      _
    // Predicated region
    $region10: #{_forward.3} parent=1 // pred_check
      _
    $region11: #{_forward.3} parent=1 // pred_check_branch
      %35 = sbr.rel (0) target = $region13
    $region12: #{_forward.3} parent=1 // pred_region
      %s37 = ssub.s32 256, 256
      %38 = vsyncadd [#allocation6], %s37
      %s39 = sshll.u32 [#allocation7], 4
      %s40 = int_to_ptr.vmem [resolvable:$true] %s39
      %45 = dma.hbm_to_vmem [thread:$0]  %s2, 256, %s40, [#allocation6], 64, 64, 4
    $region13: #{_forward.3} parent=1 // pred_fallthru
      _
    // Predicated region
    $region14: #{_forward.3} parent=1 // pred_check
      _
    $region15: #{_forward.3} parent=1 // pred_check_branch
      %47 = sbr.rel (0) target = $region17
    $region16: #{_forward.3} parent=1 // pred_region
      %48 = dma.done [#allocation3], 128
    $region17: #{_forward.3} parent=1 // pred_fallthru
      _
    // Predicated region
    $region18: #{_forward.3} parent=1 // pred_check
      _
    $region19: #{_forward.3} parent=1 // pred_check_branch
      %50 = sbr.rel (0) target = $region21
    $region20: #{_forward.3} parent=1 // pred_region
      %51 = dma.done [#allocation6], 64
    $region21: #{_forward.3} parent=1 // pred_fallthru
      _
    // Predicated region
    $region22: #{_forward.3} parent=1 // pred_check
      _
    $region23: #{_forward.3} parent=1 // pred_check_branch
      %53 = sbr.rel (0) target = $region25
    $region24: #{_forward.3} parent=1 // pred_region
      %54 = dma.done [#allocation6], 256
    $region25: #{_forward.3} parent=1 // pred_fallthru
      _
    %v56 = vld [vmem:[#allocation5] sm:$0xf]
    %v57 = vld [vmem:[#allocation7] sm:$0xf]
    %v58 = vld [vmem:[#allocation7 + $0x4] sm:$0xf]
    %v59 = vld [vmem:[#allocation7 + $0x8] sm:$0xf]
    %v60 = vld [vmem:[#allocation7 + $0xc] sm:$0xf]
    %v65 = vunpack.c.l.b16 %v57
    %v66 = vunpack.c.l.b16 %v58
    %v67 = vunpack.c.l.b16 %v59
    %v68 = vunpack.c.l.b16 %v60
    %v69 = vpack.c.b16 %v66, %v65
    %v70 = vpack.c.b16 %v68, %v67
    %vm73 = vcmask 261120
    %v75 = vsel %vm73, %v56, 0
    %77 = vmatprep.subr.bf16.mxu0 0
    %78 = vmatpush1.bf16.msra.mxu0 %v69
    %79 = vmatprep.subr.bf16.mxu0 0
    %80 = vmatpush1.bf16.msra.mxu0 %v70
    %81 = vmatprep.subr.bf16.mxu0 0
    %82 = vmatpush1.bf16.msra.mxu0 0
    %83 = vmatprep.subr.bf16.mxu0 0
    %84 = vmatpush1.bf16.msra.mxu0 0
    %85 = vmatprep.subr.bf16.mxu0 0
    %86 = vmatpush1.bf16.msra.mxu0 0
    %87 = vmatprep.subr.bf16.mxu0 0
    %88 = vmatpush1.bf16.msra.mxu0 0
    %89 = vmatprep.subr.bf16.mxu0 0
    %90 = vmatpush1.bf16.msra.mxu0 0
    %91 = vmatprep.subr.bf16.mxu0 0
    %92 = vmatpush1.bf16.msra.mxu0 0
    %93 = vmatprep.subr.bf16.mxu0 0
    %94 = vmatpush1.bf16.msra.mxu0 0
    %95 = vmatprep.subr.bf16.mxu0 0
    %96 = vmatpush1.bf16.msra.mxu0 0
    %97 = vmatprep.subr.bf16.mxu0 0
    %98 = vmatpush1.bf16.msra.mxu0 0
    %99 = vmatprep.subr.bf16.mxu0 0
    %100 = vmatpush1.bf16.msra.mxu0 0
    %101 = vmatprep.subr.bf16.mxu0 0
    %102 = vmatpush1.bf16.msra.mxu0 0
    %103 = vmatprep.subr.bf16.mxu0 0
    %104 = vmatpush1.bf16.msra.mxu0 0
    %105 = vmatprep.subr.bf16.mxu0 0
    %106 = vmatpush1.bf16.msra.mxu0 0
    %107 = vmatprep.subr.bf16.mxu0 0
    %108 = vmatpush1.bf16.msra.mxu0 0
    %109 = vmatprep.mubr.bf16.mxu0 0
    %110 = vmatmul.mubr.bf16.gmra.mrb[0].mxu0 %v75
    %v111 = vpop.f32.mrb[0].mxu0
    %v112 = vadd.f32 0.0, %v111
    %v113 = vpop.f32.mrb[0].mxu0
    %v114 = vpop.f32.mrb[0].mxu0
    %v115 = vpop.f32.mrb[0].mxu0
    %116 = vdwg.mxu0
    %v117 = vld [vmem:[#allocation2] sm:$0xff]
    %v118 = vlaneseq
    %v119 = vand.u32 %v118, 127
    %v120 = vmul.f32 %v112, 2.0
    %s121 = smul.u32 0, 8
    %v122 = vlaneseq
    %v123 = vshrl.u32 %v122, 7
    %v124 = vstv %s121
    %v125 = vadd.s32 %v124, %v123
    %vm126 = vcmp.eq.s32.totalorder %v119, %v125
    %v127 = vsel %vm126, -1e+30, %v120
    %v128 = vsub.f32 %v127, 2.1
    %v129 = vmul.f32 %v128, 1.442695
    %v130 = vpow.pop %v129
    %vm131 = vcmask 64512
    %v132 = vsel %vm131, %v130, 0.0
    %133 = vadd.xlane.f32.xlu0 %v132
    %v134 = vpop.xlane.xlu0 %133
    %135 = vset.pattern.permute.xlu0 1
    %136 = vperm.xlu0 %135, %v117
    %v137 = vpop.permute.xlu0 %136
    %vm138 = vcmp.eq.s32.totalorder %v119, %v137
    %v139 = vsel %vm138, %v120, 0.0
    %v140 = vsel %vm131, %v139, 0.0
    %141 = vadd.xlane.f32.xlu0 %v140
    %v142 = vpop.xlane.xlu0 %141
    %v143 = vlog2.pop %v134
    %v144 = vmul.f32 %v143, 0.6931472
    %v145 = vadd.f32 %v144, 2.1
    %v146 = vsub.f32 %v145, %v142
    %vm147 = vcmask 7168
    %148 = vst.msk [vmem:[#allocation9] sm:$0xff] %vm147, %v146
    %149 = vset.pattern.permute.xlu0 2
    %150 = vperm.xlu0 %149, %v117
    %v151 = vpop.permute.xlu0 %150
    %vm152 = vcmp.lt.s32.totalorder %v119, %v151
    %v153 = vsub.s32 %v117, 1
    %154 = vset.pattern.permute.xlu0 3
    %155 = vperm.xlu0 %154, %v153
    %v156 = vpop.permute.xlu0 %155
    %vm157 = vcmp.lt.s32.totalorder %v119, %v156
    %159 = vrot.lane.b32.xlu0 %v112, 127
    %v160 = vpop.permute.xlu0 %159
    %162 = vrot.lane.b32.xlu0 %v112, 126
    %v163 = vpop.permute.xlu0 %162
    %v165 = vsel %vm157, %v160, %v163
    %v166 = vsel %vm152, %v112, %v165
    %v167 = vpack.c.bf16 %v166, %v166
    %vm168 = vcmask 44032
    %169 = vst.msk [vmem:[#allocation8] sm:$0xf] %vm168, %v167
    // Predicated region
    $region26: #{_forward.3} parent=1 // pred_check
      _
    $region27: #{_forward.3} parent=1 // pred_check_branch
      %171 = sbr.rel (0) target = $region29
    $region28: #{_forward.3} parent=1 // pred_region
      %s173 = ssub.s32 64, 64
      %174 = vsyncadd [#allocation4], %s173
      %s176 = sshll.u32 [#allocation8], 4
      %s177 = int_to_ptr.vmem [resolvable:$true] %s176
      %179 = dma.vmem_to_hbm [thread:$0]  %s177, 64, %s3, [#allocation4]
    $region29: #{_forward.3} parent=1 // pred_fallthru
      _
    // Predicated region
    $region30: #{_forward.3} parent=1 // pred_check
      _
    $region31: #{_forward.3} parent=1 // pred_check_branch
      %181 = sbr.rel (0) target = $region33
    $region32: #{_forward.3} parent=1 // pred_region
      %s183 = ssub.s32 128, 128
      %184 = vsyncadd [#allocation10], %s183
      %s186 = sshll.u32 [#allocation9], 4
      %s187 = int_to_ptr.vmem [resolvable:$true] %s186
      %189 = dma.vmem_to_hbm [thread:$0]  %s187, 128, %s4, [#allocation10]
    $region33: #{_forward.3} parent=1 // pred_fallthru
      _
    // Predicated region
    $region34: #{_forward.3} parent=1 // pred_check
      _
    $region35: #{_forward.3} parent=1 // pred_check_branch
      %191 = sbr.rel (0) target = $region37
    $region36: #{_forward.3} parent=1 // pred_region
      %192 = dma.done [#allocation4], 64
    $region37: #{_forward.3} parent=1 // pred_fallthru
      _
    // Predicated region
    $region38: #{_forward.3} parent=1 // pred_check
      _
    $region39: #{_forward.3} parent=1 // pred_check_branch
      %194 = sbr.rel (0) target = $region41
    $region40: #{_forward.3} parent=1 // pred_region
      %195 = dma.done [#allocation10], 128
    $region41: #{_forward.3} parent=1 // pred_fallthru
      _
    %196 = vsyncpa [#allocation3], 1
    %197 = vsyncpa [#allocation6], 1
    %198 = vsyncpa [#allocation4], 1
    %199 = vsyncpa [#allocation10], 1

</llo_original>
